<compile_context>
chip_gen: v7x
topology: tpu7x:2x2x1
jax: 0.10.0
libtpu: 0.0.40
codegen_flags: <defaults>
</compile_context>

<pallas_src>
import functools

import numpy as np
import jax
import jax.numpy as jnp
from jax import lax
from jax.experimental import pallas as pl
from jax.experimental.pallas import tpu as pltpu

LEAKY_SLOPE = 0.01
BN_EPS = 1e-5
CS = [32, 32, 64, 128, 256, 256, 128, 96, 96]

MXU_DTYPE = jnp.bfloat16        # matmul operands + canvases
ACT_DTYPE = jnp.bfloat16        # activations stored in HBM between blocks
ACC_DTYPE = jnp.float32         # accumulation + epilogue math

_K_FUSE_MAX_CIN = 128           # K-fuse (concat k*k taps) when cin < this


def _round_up(x, m):
    return ((x + m - 1) // m) * m


# --------------------------------------------------------------------------
# pltpu.roll direction probe (verified once with a tiny kernel).
# --------------------------------------------------------------------------
_ROLL_MATCHES_JNP = None


def _ensure_roll_semantics():
    global _ROLL_MATCHES_JNP
    if _ROLL_MATCHES_JNP is not None:
        return

    def kern(x_ref, o_ref):
        o_ref[...] = pltpu.roll(x_ref[...], shift=1, axis=0)

    x = jnp.arange(8 * 128, dtype=jnp.float32).reshape(8, 128)
    y = pl.pallas_call(
        kern,
        out_shape=jax.ShapeDtypeStruct((8, 128), jnp.float32),
        in_specs=[pl.BlockSpec(memory_space=pltpu.MemorySpace.VMEM)],
        out_specs=pl.BlockSpec(memory_space=pltpu.MemorySpace.VMEM),
    )(x)
    _ROLL_MATCHES_JNP = bool(np.array_equal(np.asarray(y)[1], np.asarray(x)[0]))


# --------------------------------------------------------------------------
# In-kernel helpers.
# --------------------------------------------------------------------------
def _shift_flat(a, delta):
    """out[p] = a[(p + delta) % M] along axis 0 (static integer delta)."""
    m = a.shape[0]
    d = delta % m
    if d == 0:
        return a
    amt = (m - d) if _ROLL_MATCHES_JNP else d
    return pltpu.roll(a, shift=amt, axis=0)


def _pack_canvas(cv_ref, top, x, bot, pc, w):
    """Write [top_halo | tile | bot_halo] rows into the bf16 canvas; only the
    pad columns at the end of each row are zeroed.  Returns the flat canvas."""
    hc, wc, c = cv_ref.shape
    th = x.shape[0]
    if wc > w:
        cv_ref[:, w:, :] = jnp.zeros((hc, wc - w, c), cv_ref.dtype)
    cv_ref[0:pc, 0:w, :] = top.astype(cv_ref.dtype)
    cv_ref[pc:pc + th, 0:w, :] = x.astype(cv_ref.dtype)
    cv_ref[pc + th:hc, 0:w, :] = bot.astype(cv_ref.dtype)
    return cv_ref[...].reshape(hc * wc, c)


def _image_mask(hc, wc, pc, th, w):
    """(Hc*Wc, 1) f32 mask: 1 where the canvas position is inside the image
    (halo rows are in-image except on the first/last row tile; pad cols never)."""
    t = pl.program_id(1)
    nt = pl.num_programs(1)
    ri = lax.broadcasted_iota(jnp.int32, (hc, wc), 0)
    ci = lax.broadcasted_iota(jnp.int32, (hc, wc), 1)
    rows_ok = jnp.logical_and(jnp.logical_or(t > 0, ri >= pc),
                              jnp.logical_or(t < nt - 1, ri < pc + th))
    m = jnp.logical_and(rows_ok, ci < w)
    return jnp.where(m, 1.0, 0.0).reshape(hc * wc, 1).astype(ACC_DTYPE)


def _unpack_interior(y_flat, hc, wc, pc, th, w):
    return y_flat.reshape(hc, wc, y_flat.shape[-1])[pc:pc + th, 0:w, :]


def _conv_flat(canvases, w_refs, bias, *, k, dil, wc, act=True,
               scale=None, shift=None, residual=None, mask=None):
    """'Same' k x k stride-1 conv on flat zero-ring canvases.

    canvases : list of (M, cin_i) arrays (ring / out-of-image zeros as needed)
    w_refs   : 2-D (k*k*cin_i, cout) refs -> K-fused single matmul per canvas;
               3-D (k*k, cin_i, cout) refs -> per-tap matmuls (large cin).
    Epilogue (f32): bias -> LeakyReLU -> BN(eval) affine -> residual -> mask.
    """
    half = dil * (k - 1) // 2
    acc = None
    for a, wr in zip(canvases, w_refs):
        a = a.astype(MXU_DTYPE)                       # cast once, roll bf16
        if len(wr.shape) == 2:                        # K-fused path
            if k == 1:
                lhs = a
            else:
                taps = []
                for kh in range(k):
                    for kw in range(k):
                        delta = (kh * dil - half) * wc + (kw * dil - half)
                        taps.append(_shift_flat(a, delta))
                lhs = jnp.concatenate(taps, axis=-1)  # (M, k*k*cin)
            part = jnp.dot(lhs, wr[...], preferred_element_type=ACC_DTYPE)
            acc = part if acc is None else acc + part
        else:                                         # per-tap path (cin >= 128)
            t = 0
            for kh in range(k):
                for kw in range(k):
                    delta = (kh * dil - half) * wc + (kw * dil - half)
                    tap = _shift_flat(a, delta)
                    part = jnp.dot(tap, wr[t], preferred_element_type=ACC_DTYPE)
                    acc = part if acc is None else acc + part
                    t += 1
    y = acc + bias
    if act:
        y = jnp.where(y >= 0.0, y, y * LEAKY_SLOPE)   # LeakyReLU(0.01)
    if scale is not None:
        y = y * scale + shift                         # BatchNorm (eval) affine
    if residual is not None:
        y = y + residual
    if mask is not None:
        y = y * mask
    return y


# --------------------------------------------------------------------------
# Fused block kernels.
# --------------------------------------------------------------------------
def _res_context_kernel(x_ref, top_ref, bot_ref,
                        w1_ref, b1_ref, w2_ref, b2_ref, s1_ref, t1_ref,
                        w3_ref, b3_ref, s2_ref, t2_ref,
                        o_ref, cv_ref):
    hc, wc, _ = cv_ref.shape
    _, th, w, _ = x_ref.shape
    pc = top_ref.shape[2]
    mask = _image_mask(hc, wc, pc, th, w)
    a0 = _pack_canvas(cv_ref, top_ref[0, 0], x_ref[0], bot_ref[0, 0], pc, w)

    # conv1 1x1 + LeakyReLU (shortcut); masked so chained convs see zero padding.
    sc = _conv_flat([a0], [w1_ref], b1_ref[...], k=1, dil=1, wc=wc, act=True,
                    mask=mask)
    # conv2 3x3 + LeakyReLU + BN1
    a1 = _conv_flat([sc], [w2_ref], b2_ref[...], k=3, dil=1, wc=wc, act=True,
                    scale=s1_ref[...], shift=t1_ref[...], mask=mask)
    # conv3 3x3 dil=2 + LeakyReLU + BN2, then + shortcut
    y = _conv_flat([a1], [w3_ref], b3_ref[...], k=3, dil=2, wc=wc, act=True,
                   scale=s2_ref[...], shift=t2_ref[...], residual=sc)
    o_ref[0] = _unpack_interior(y, hc, wc, pc, th, w).astype(o_ref.dtype)


def _res_block_kernel(x_ref, top_ref, bot_ref,
                      w1_ref, b1_ref, w2_ref, b2_ref, s_ref, t_ref,
                      *rest, pooling):
    if pooling:
        skip_ref, pool_ref, cv_ref = rest
    else:
        skip_ref, cv_ref = rest
    hc, wc, _ = cv_ref.shape
    _, th, w, _ = x_ref.shape
    pc = top_ref.shape[2]
    a0 = _pack_canvas(cv_ref, top_ref[0, 0], x_ref[0], bot_ref[0, 0], pc, w)

    # shortcut = LeakyReLU(conv1_1x1(x)); resA = shortcut + BN1(LeakyReLU(conv2_3x3(x)))
    sc = _conv_flat([a0], [w1_ref], b1_ref[...], k=1, dil=1, wc=wc, act=True)
    mask = _image_mask(hc, wc, pc, th, w) if pooling else None
    res = _conv_flat([a0], [w2_ref], b2_ref[...], k=3, dil=1, wc=wc, act=True,
                     scale=s_ref[...], shift=t_ref[...], residual=sc, mask=mask)
    skip_ref[0] = _unpack_interior(res, hc, wc, pc, th, w).astype(skip_ref.dtype)

    if pooling:
        # AvgPool2d(3, stride=2, padding=1, count_include_pad=True), separable:
        # row-sum -> decimate rows -> col-sum -> decimate cols -> /9.
        c = res.shape[-1]
        rs = res + _shift_flat(res, wc) + _shift_flat(res, -wc)
        rs_dec = rs.reshape(hc, wc, c)[pc:pc + th] \
                   .reshape(th // 2, 2, wc, c)[:, 0]          # canvas rows pc, pc+2, ..
        rsf = rs_dec.reshape((th // 2) * wc, c)
        cs = rsf + _shift_flat(rsf, 1) + _shift_flat(rsf, -1)
        pooled = cs.reshape(th // 2, wc, c)[:, 0:w] \
                   .reshape(th // 2, w // 2, 2, c)[:, :, 0] * (1.0 / 9.0)
        pool_ref[0] = pooled.astype(pool_ref.dtype)


def _up_block_kernel(*refs, has_cls):
    if has_cls:
        (ua_ref, ua_top, ua_bot, sk_ref, sk_top, sk_bot,
         wa_ref, wb_ref, b_ref, s_ref, t_ref, cw_ref, cb_ref,
         o_ref, lg_ref, cva_ref, cvb_ref) = refs
    else:
        (ua_ref, ua_top, ua_bot, sk_ref, sk_top, sk_bot,
         wa_ref, wb_ref, b_ref, s_ref, t_ref,
         o_ref, cva_ref, cvb_ref) = refs
    hc, wc, _ = cva_ref.shape
    _, th, w, _ = ua_ref.shape
    pc = ua_top.shape[2]

    # torch.cat((PixelShuffle(x), skip), dim=1) -> 3x3 conv done with two
    # canvases and a channel-split weight (no channel concat in VMEM).
    aa = _pack_canvas(cva_ref, ua_top[0, 0], ua_ref[0], ua_bot[0, 0], pc, w)
    ab = _pack_canvas(cvb_ref, sk_top[0, 0], sk_ref[0], sk_bot[0, 0], pc, w)
    y = _conv_flat([aa, ab], [wa_ref, wb_ref], b_ref[...], k=3, dil=1, wc=wc,
                   act=True, scale=s_ref[...], shift=t_ref[...])
    o_ref[0] = _unpack_interior(y, hc, wc, pc, th, w).astype(o_ref.dtype)

    if has_cls:
        # fused 1x1 classifier (no activation / no BN)
        lg = jnp.dot(y.astype(MXU_DTYPE), cw_ref[...],
                     preferred_element_type=ACC_DTYPE) + cb_ref[...]
        lg_ref[0] = _unpack_interior(lg, hc, wc, pc, th, w).astype(lg_ref.dtype)


# --------------------------------------------------------------------------
# pallas_call wrappers.
# --------------------------------------------------------------------------
def _tile_spec(th, w, c):
    return pl.BlockSpec((1, th, w, c), lambda b, t: (b, t, 0, 0))


def _halo_spec(pc, w, c):
    return pl.BlockSpec((1, 1, pc, w, c), lambda b, t: (b, t, 0, 0, 0))


def _rep_spec(shape):
    nd = len(shape)
    return pl.BlockSpec(tuple(shape), lambda b, t: (0,) * nd)


def _pick_tile(h, target, min_pc):
    """Largest even row-tile <= target dividing h (>= max(4, min_pc))."""
    if h <= target:
        return h, 1
    lo = max(4, min_pc)
    for cand in range(min(target, h), lo - 1, -1):
        if h % cand == 0 and cand % 2 == 0:
            return cand, h // cand
    return h, 1


def _make_halos(x, n_t, th, pc):
    n, h, w, c = x.shape
    zero = jnp.zeros((n, 1, pc, w, c), x.dtype)
    if n_t == 1:
        return zero, zero
    xt = x.reshape(n, n_t, th, w, c)
    top = jnp.concatenate([zero, xt[:, :-1, th - pc:]], axis=1)
    bot = jnp.concatenate([xt[:, 1:, :pc], zero], axis=1)
    return top, bot


_VMEM_LIMIT = None


def _compiler_params():
    global _VMEM_LIMIT
    if _VMEM_LIMIT is None:
        cap = 64 * 1024 * 1024
        try:
            cap = int(pltpu.get_tpu_info().vmem_capacity_bytes)
        except Exception:
            pass
        _VMEM_LIMIT = int(min(100 * 1024 * 1024, (cap * 3) // 4))
    return pltpu.CompilerParams(dimension_semantics=("parallel", "parallel"),
                                vmem_limit_bytes=_VMEM_LIMIT)


def _cost(flops, arrays, out_shapes):
    nbytes = 0
    for a in list(arrays) + list(out_shapes):
        nbytes += int(np.prod(a.shape)) * jnp.dtype(a.dtype).itemsize
    return pl.CostEstimate(flops=int(flops), transcendentals=0,
                           bytes_accessed=int(nbytes))


def _maybe_kfuse(w):
    """(k*k, cin, cout) -> (k*k*cin, cout) when cin < 128 (K-fused matmul)."""
    kk, cin, cout = w.shape
    if cin < _K_FUSE_MAX_CIN:
        return w.reshape(kk * cin, cout)
    return w


def res_context_block(p, x, row_tile):
    _ensure_roll_semantics()
    n, h, w, cin = x.shape
    cout = p["conv1"]["w"].shape[-1]
    pc, cw = 3, 2                                 # total receptive radius: 1 + 2
    th, n_t = _pick_tile(h, row_tile, pc)
    wc = _round_up(w + cw, 8)
    top, bot = _make_halos(x, n_t, th, pc)

    w1 = p["conv1"]["w"].reshape(cin, cout)
    w2 = _maybe_kfuse(p["conv2"]["w"])
    w3 = _maybe_kfuse(p["conv3"]["w"])
    args = (x, top, bot,
            w1, p["conv1"]["b"],
            w2, p["conv2"]["b"], p["bn1"]["s"], p["bn1"]["t"],
            w3, p["conv3"]["b"], p["bn2"]["s"], p["bn2"]["t"])
    out_sd = jax.ShapeDtypeStruct((n, h, w, cout), ACT_DTYPE)
    flops = 2 * n * h * w * (cin * cout + 18 * cout * cout)
    in_specs = ([_tile_spec(th, w, cin), _halo_spec(pc, w, cin),
                 _halo_spec(pc, w, cin)] + [_rep_spec(a.shape) for a in args[3:]])
    return pl.pallas_call(
        _res_context_kernel,
        out_shape=out_sd,
        grid=(n, n_t),
        in_specs=in_specs,
        out_specs=pl.BlockSpec((1, th, w, cout), lambda b, t: (b, t, 0, 0)),
        scratch_shapes=[pltpu.VMEM((th + 2 * pc, wc, cin), MXU_DTYPE)],
        compiler_params=_compiler_params(),
        cost_estimate=_cost(flops, args, [out_sd]),
    )(*args)


def res_block(p, x, pooling, row_tile):
    _ensure_roll_semantics()
    n, h, w, cin = x.shape
    cout = p["conv1"]["w"].shape[-1]
    pc, cw = (2, 1) if pooling else (1, 1)        # pooling needs res at row -1
    th, n_t = _pick_tile(h, row_tile, pc)
    if pooling:
        # TODO(synk): AvgPool path assumes even H/W (floor((H-1)/2)+1 == H/2).
        assert h % 2 == 0 and w % 2 == 0 and th % 2 == 0
    wc = _round_up(w + cw, 8)
    top, bot = _make_halos(x, n_t, th, pc)

    w1 = p["conv1"]["w"].reshape(cin, cout)
    w2 = _maybe_kfuse(p["conv2"]["w"])
    args = (x, top, bot, w1, p["conv1"]["b"], w2, p["conv2"]["b"],
            p["bn1"]["s"], p["bn1"]["t"])
    skip_sd = jax.ShapeDtypeStruct((n, h, w, cout), ACT_DTYPE)
    flops = 2 * n * h * w * 10 * cin * cout
    in_specs = ([_tile_spec(th, w, cin), _halo_spec(pc, w, cin),
                 _halo_spec(pc, w, cin)] + [_rep_spec(a.shape) for a in args[3:]])
    if pooling:
        pool_sd = jax.ShapeDtypeStruct((n, h // 2, w // 2, cout), ACT_DTYPE)
        out_shape = (skip_sd, pool_sd)
        out_specs = (pl.BlockSpec((1, th, w, cout), lambda b, t: (b, t, 0, 0)),
                     pl.BlockSpec((1, th // 2, w // 2, cout),
                                  lambda b, t: (b, t, 0, 0)))
        outs = [skip_sd, pool_sd]
    else:
        out_shape = skip_sd
        out_specs = pl.BlockSpec((1, th, w, cout), lambda b, t: (b, t, 0, 0))
        outs = [skip_sd]
    out = pl.pallas_call(
        functools.partial(_res_block_kernel, pooling=pooling),
        out_shape=out_shape,
        grid=(n, n_t),
        in_specs=in_specs,
        out_specs=out_specs,
        scratch_shapes=[pltpu.VMEM((th + 2 * pc, wc, cin), MXU_DTYPE)],
        compiler_params=_compiler_params(),
        cost_estimate=_cost(flops, args, outs),
    )(*args)
    if pooling:
        skip, pooled = out
        return pooled, skip                       # (resB, resA) like the reference
    return out


def _pixel_shuffle_nhwc(x, r=2):
    # PyTorch PixelShuffle: channel index = c * r*r + i * r + j
    n, h, w, c = x.shape
    co = c // (r * r)
    x = x.reshape(n, h, w, co, r, r)
    x = jnp.transpose(x, (0, 1, 4, 2, 5, 3))
    return x.reshape(n, h * r, w * r, co)


def up_block(p, x, skip, row_tile, cls=None):
    _ensure_roll_semantics()
    # TODO(synk): PixelShuffle stays in XLA (the interleaving transpose lowers
    # poorly inside Mosaic); Dropout2d uses eval (identity) semantics.
    upa = _pixel_shuffle_nhwc(x, 2)
    n, h, w, ca = upa.shape
    cb = skip.shape[-1]
    cout = p["conv1"]["w"].shape[-1]
    pc, cw = 1, 1
    th, n_t = _pick_tile(h, row_tile, pc)
    wc = _round_up(w + cw, 8)
    ua_top, ua_bot = _make_halos(upa, n_t, th, pc)
    sk_top, sk_bot = _make_halos(skip, n_t, th, pc)

    wa = _maybe_kfuse(p["conv1"]["w"][:, :ca, :])
    wb = _maybe_kfuse(p["conv1"]["w"][:, ca:, :])
    args = [upa, ua_top, ua_bot, skip, sk_top, sk_bot,
            wa, wb, p["conv1"]["b"], p["bn1"]["s"], p["bn1"]["t"]]
    out_sds = [jax.ShapeDtypeStruct((n, h, w, cout), ACT_DTYPE)]
    out_specs = [pl.BlockSpec((1, th, w, cout), lambda b, t: (b, t, 0, 0))]
    flops = 2 * n * h * w * 9 * (ca + cb) * cout
    if cls is not None:
        ncls = cls["w"].shape[-1]
        args += [cls["w"].reshape(cout, ncls), cls["b"]]
        out_sds.append(jax.ShapeDtypeStruct((n, h, w, ncls), jnp.float32))
        out_specs.append(pl.BlockSpec((1, th, w, ncls), lambda b, t: (b, t, 0, 0)))
        flops += 2 * n * h * w * cout * ncls
    in_specs = ([_tile_spec(th, w, ca), _halo_spec(pc, w, ca), _halo_spec(pc, w, ca),
                 _tile_spec(th, w, cb), _halo_spec(pc, w, cb), _halo_spec(pc, w, cb)]
                + [_rep_spec(a.shape) for a in args[6:]])
    return pl.pallas_call(
        functools.partial(_up_block_kernel, has_cls=cls is not None),
        out_shape=tuple(out_sds) if len(out_sds) > 1 else out_sds[0],
        grid=(n, n_t),
        in_specs=in_specs,
        out_specs=tuple(out_specs) if len(out_specs) > 1 else out_specs[0],
        scratch_shapes=[pltpu.VMEM((th + 2 * pc, wc, ca), MXU_DTYPE),
                        pltpu.VMEM((th + 2 * pc, wc, cb), MXU_DTYPE)],
        compiler_params=_compiler_params(),
        cost_estimate=_cost(flops, args, out_sds),
    )(*args)


# --------------------------------------------------------------------------
# Parameters.
# --------------------------------------------------------------------------
class _Rng:
    def __init__(self, key):
        self._key = key

    def next(self):
        self._key, k = jax.random.split(self._key)
        return k


def _make_conv(rng, cin, cout, k):
    w = 0.05 * jax.random.normal(rng.next(), (k * k, cin, cout), jnp.float32)
    b = 0.05 * jax.random.normal(rng.next(), (1, cout), jnp.float32)
    return {"w": w.astype(MXU_DTYPE), "b": b}


def _make_bn(rng, c):
    # TODO(synk): BatchNorm2d / Dropout2d use eval (inference) semantics.
    gamma = 1.0 + 0.1 * jax.random.normal(rng.next(), (c,), jnp.float32)
    beta = 0.1 * jax.random.normal(rng.next(), (c,), jnp.float32)
    run_mean = jnp.zeros((c,), jnp.float32)
    run_var = jnp.ones((c,), jnp.float32)
    s = gamma / jnp.sqrt(run_var + BN_EPS)
    t = beta - run_mean * s
    return {"s": s.reshape(1, c), "t": t.reshape(1, c)}


def _make_res_context(rng, cin, cout):
    return {"conv1": _make_conv(rng, cin, cout, 1),
            "conv2": _make_conv(rng, cout, cout, 3),
            "bn1": _make_bn(rng, cout),
            "conv3": _make_conv(rng, cout, cout, 3),
            "bn2": _make_bn(rng, cout)}


def _make_res_block(rng, cin, cout):
    return {"conv1": _make_conv(rng, cin, cout, 1),
            "conv2": _make_conv(rng, cin, cout, 3),
            "bn1": _make_bn(rng, cout)}


def _make_up_block(rng, mid, cout):
    return {"conv1": _make_conv(rng, mid, cout, 3), "bn1": _make_bn(rng, cout)}


def make_unet2d_params(key, input_dim=3, num_class=20):
    rng = _Rng(key)
    cs = CS
    cin_pad = _round_up(input_dim, 8)   # input channels zero-padded (identical math)
    return {
        "stem": [_make_res_context(rng, cin_pad, cs[0]),
                 _make_res_context(rng, cs[0], cs[0]),
                 _make_res_context(rng, cs[0], cs[0])],
        "stage1": _make_res_block(rng, cs[0], cs[1]),
        "stage2": _make_res_block(rng, cs[1], cs[2]),
        "stage3": _make_res_block(rng, cs[2], cs[3]),
        "stage4": _make_res_block(rng, cs[3], cs[4]),
        "mid": _make_res_block(rng, cs[4], cs[4]),
        "up1": _make_up_block(rng, cs[4] // 4 + cs[4], cs[5]),
        "up2": _make_up_block(rng, cs[5] // 4 + cs[3], cs[6]),
        "up3": _make_up_block(rng, cs[6] // 4 + cs[2], cs[7]),
        "up4": _make_up_block(rng, cs[7] // 4 + cs[1], cs[8]),
        "classifier": _make_conv(rng, cs[8], num_class, 1),
        "num_class": num_class,
        "input_dim": input_dim,
        "input_pad": cin_pad,
    }


# --------------------------------------------------------------------------
# UNet2D forward.
# --------------------------------------------------------------------------
def unet2d_forward(params, data_dict, row_tile=64):
    _ensure_roll_semantics()
    cs = CS
    num_class = params["num_class"]
    x_nchw = data_dict["image_input"]                    # (Nimg, C, H, W)
    n_img, c_in, h_img, w_img = x_nchw.shape
    x = jnp.transpose(x_nchw, (0, 2, 3, 1)).astype(ACT_DTYPE)   # NHWC bf16
    pad = params["input_pad"] - c_in
    if pad > 0:
        x = jnp.concatenate(
            [x, jnp.zeros((n_img, h_img, w_img, pad), x.dtype)], axis=-1)

    for p in params["stem"]:
        x = res_context_block(p, x, row_tile)
    x1, s1 = res_block(params["stage1"], x, True, row_tile)
    x2, s2 = res_block(params["stage2"], x1, True, row_tile)
    x3, s3 = res_block(params["stage3"], x2, True, row_tile)
    x4, s4 = res_block(params["stage4"], x3, True, row_tile)
    x5 = res_block(params["mid"], x4, False, row_tile)
    u1 = up_block(params["up1"], x5, s4, row_tile)
    u2 = up_block(params["up2"], u1, s3, row_tile)
    u3 = up_block(params["up3"], u2, s2, row_tile)
    u4, logits = up_block(params["up4"], u3, s1, row_tile,
                          cls=params["classifier"])

    data_dict["image_logits"] = jnp.transpose(logits, (0, 3, 1, 2))   # NCHW f32

    # ---- FOV gather (host/JAX glue mirroring the sparse-tensor indexing) ----
    # TODO(synk): the per-batch boolean masking over lidar_fov coords stays as
    # host-side numpy glue (not jittable), mirroring the reference loop.
    offsets = data_dict["offset_img"]
    batch_size = len(offsets)
    sem_nhwc = jnp.transpose(data_dict["semantic_map_ms"], (0, 2, 3, 1))
    img_nhwc = jnp.transpose(x_nchw, (0, 2, 3, 1))
    lidar_c = np.asarray(data_dict["lidar_fov_C"])
    lidar_f = np.asarray(data_dict["lidar_fov_F"])

    s0_logits, s0_tgt, s0_rgb, s0_feat, s4_feat = [], [], [], [], []
    for bi in range(batch_size):
        start = offsets[bi - 1] if bi > 0 else 0
        end = offsets[bi]
        lg = logits[start:end].reshape(-1, w_img, num_class)
        tg = sem_nhwc[start:end].reshape(-1, w_img)
        rgb = img_nhwc[start:end].reshape(-1, w_img, c_in)
        f0 = u4[start:end].reshape(-1, w_img, cs[8])
        f4 = u2[start:end].reshape(-1, w_img // 4, cs[6])
        mask = lidar_c[:, -1] == bi
        idx = lidar_f[mask][:, -2:].astype(np.int64)
        r = jnp.asarray(idx[:, 0])
        c = jnp.asarray(idx[:, 1])
        s0_logits.append(lg[r, c])
        s0_tgt.append(tg[r, c])
        s0_rgb.append(rgb[r, c])
        s0_feat.append(f0[r, c])
        s4_feat.append(f4[r // 4, c // 4])

    data_dict["image_logits_fov"] = jnp.concatenate(s0_logits, axis=0)
    data_dict["image_targets_fov"] = jnp.concatenate(s0_tgt, axis=0)
    data_dict["image_rgb_fov"] = jnp.concatenate(s0_rgb, axis=0)
    data_dict["image_features_fov"] = jnp.concatenate(
        [jnp.concatenate(s0_feat, axis=0), jnp.concatenate(s4_feat, axis=0)],
        axis=-1).astype(jnp.float32)
    return data_dict


# --------------------------------------------------------------------------
# Pure-JAX reference (same bf16 operand / f32 accumulation numerics) for a
# correctness self-check of the Pallas path.
# --------------------------------------------------------------------------
def _ref_leaky(y):
    return jnp.where(y >= 0.0, y, LEAKY_SLOPE * y)


def _ref_conv(x, w, b, k, dil=1):
    wk = w.reshape(k, k, w.shape[-2], w.shape[-1]).astype(MXU_DTYPE)
    pad = dil * (k - 1) // 2
    y = lax.conv_general_dilated(
        x.astype(MXU_DTYPE), wk, (1, 1), [(pad, pad), (pad, pad)],
        rhs_dilation=(dil, dil),
        dimension_numbers=("NHWC", "HWIO", "NHWC"),
        preferred_element_type=ACC_DTYPE)
    return y + b.reshape(1, 1, 1, -1)


def _ref_bn(y, bn):
    return y * bn["s"].reshape(1, 1, 1, -1) + bn["t"].reshape(1, 1, 1, -1)


def _ref_res_context(p, x):
    sc = _ref_leaky(_ref_conv(x, p["conv1"]["w"], p["conv1"]["b"], 1))
    a = _ref_bn(_ref_leaky(_ref_conv(sc.astype(ACT_DTYPE),
                                     p["conv2"]["w"], p["conv2"]["b"], 3)),
                p["bn1"])
    y = _ref_bn(_ref_leaky(_ref_conv(a.astype(ACT_DTYPE),
                                     p["conv3"]["w"], p["conv3"]["b"], 3, dil=2)),
                p["bn2"])
    return (sc + y).astype(ACT_DTYPE)


def _ref_res_block(p, x, pooling):
    sc = _ref_leaky(_ref_conv(x, p["conv1"]["w"], p["conv1"]["b"], 1))
    res = sc + _ref_bn(_ref_leaky(_ref_conv(x, p["conv2"]["w"],
                                            p["conv2"]["b"], 3)), p["bn1"])
    skip = res.astype(ACT_DTYPE)
    if not pooling:
        return skip
    s = lax.reduce_window(res, 0.0, lax.add, (1, 3, 3, 1), (1, 2, 2, 1),
                          [(0, 0), (1, 1), (1, 1), (0, 0)])
    return (s / 9.0).astype(ACT_DTYPE), skip


def _ref_up(p, x, skip, cls=None):
    upa = _pixel_shuffle_nhwc(x, 2)
    cat = jnp.concatenate([upa, skip], axis=-1)
    y = _ref_bn(_ref_leaky(_ref_conv(cat, p["conv1"]["w"], p["conv1"]["b"], 3)),
                p["bn1"])
    u = y.astype(ACT_DTYPE)
    if cls is None:
        return u
    lg = _ref_conv(u, cls["w"], cls["b"], 1)
    return u, lg


def _reference_logits(params, x_nchw):
    x = jnp.transpose(x_nchw, (0, 2, 3, 1)).astype(ACT_DTYPE)
    pad = params["input_pad"] - x.shape[-1]
    if pad > 0:
        x = jnp.concatenate([x, jnp.zeros(x.shape[:-1] + (pad,), x.dtype)],
                            axis=-1)
    for p in params["stem"]:
        x = _ref_res_context(p, x)
    x1, s1 = _ref_res_block(params["stage1"], x, True)
    x2, s2 = _ref_res_block(params["stage2"], x1, True)
    x3, s3 = _ref_res_block(params["stage3"], x2, True)
    x4, s4 = _ref_res_block(params["stage4"], x3, True)
    x5 = _ref_res_block(params["mid"], x4, False)
    u1 = _ref_up(params["up1"], x5, s4)
    u2 = _ref_up(params["up2"], u1, s3)
    u3 = _ref_up(params["up3"], u2, s2)
    _, lg = _ref_up(params["up4"], u3, s1, cls=params["classifier"])
    return jnp.transpose(lg, (0, 3, 1, 2))


# ----------------------------------- main ------------------------------------
if __name__ == "__main__":
    key = jax.random.PRNGKey(0)
    k_in, k_sem, k_pts, k_params = jax.random.split(key, 4)

    n_img, c_in, h_img, w_img = 2, 3, 32, 32
    num_class = 20
    batch_size = 2
    pts_per_batch = 16

    image_input = jax.random.normal(k_in, (n_img, c_in, h_img, w_img), jnp.float32)
    semantic_map = jax.random.randint(k_sem, (n_img, 1, h_img, w_img),
                                      0, num_class).astype(jnp.int32)

    kr, kc = jax.random.split(k_pts)
    rows = np.asarray(jax.random.randint(kr, (batch_size * pts_per_batch,), 0, h_img))
    cols = np.asarray(jax.random.randint(kc, (batch_size * pts_per_batch,), 0, w_img))
    batch_idx = np.repeat(np.arange(batch_size), pts_per_batch)
    zeros = np.zeros_like(batch_idx)
    lidar_C = np.stack([zeros, zeros, zeros, batch_idx], axis=1)          # .C
    lidar_F = np.stack([np.zeros(batch_size * pts_per_batch, np.float32),
                        np.zeros(batch_size * pts_per_batch, np.float32),
                        rows.astype(np.float32),
                        cols.astype(np.float32)], axis=1)                 # .F

    data_dict = {
        "image_input": image_input,
        "semantic_map_ms": semantic_map,
        "offset_img": [1, 2],          # one image per batch element
        "lidar_fov_C": lidar_C,
        "lidar_fov_F": lidar_F,
    }

    params = make_unet2d_params(k_params, input_dim=c_in, num_class=num_class)
    # row_tile=16 exercises the multi-row-tile (halo) path on the 32-row inputs.
    out = unet2d_forward(params, data_dict, row_tile=16)

    jax.block_until_ready(out["image_logits"])
    jax.block_until_ready(out["image_logits_fov"])
    jax.block_until_ready(out["image_features_fov"])

    assert out["image_logits"].shape == (n_img, num_class, h_img, w_img)
    assert out["image_logits_fov"].shape == (batch_size * pts_per_batch, num_class)
    assert out["image_features_fov"].shape == (batch_size * pts_per_batch,
                                               CS[8] + CS[6])

    # Correctness self-check against the pure-JAX reference (same bf16 numerics).
    ref = np.asarray(_reference_logits(params, image_input), np.float32)
    got = np.asarray(out["image_logits"], np.float32)
    rel = float(np.max(np.abs(got - ref)) / (np.max(np.abs(ref)) + 1e-6))
    assert rel < 0.05, f"kernel/reference mismatch: max-rel-err={rel:.4f}"

    print("KERNEL_OK")
</pallas_src>

<mosaic_0001>
module attributes {stable_mosaic.version = 11 : i64} {
  func.func @kern(%arg0: memref<8x128xf32, #tpu.memory_space<vmem>>, %arg1: memref<8x128xf32, #tpu.memory_space<vmem>>) attributes {dimension_semantics = [], scalar_prefetch = 0 : i64, scratch_operands = 0 : i64, tpu.core_type = #tpu.core_type<tc>} {
    %c0 = arith.constant 0 : index
    %c0_0 = arith.constant 0 : index
    %0 = vector.load %arg0[%c0, %c0_0] : memref<8x128xf32, #tpu.memory_space<vmem>>, vector<8x128xf32>
    %c1_i32 = arith.constant 1 : i32
    %1 = tpu.dynamic_rotate %0 by %c1_i32 dim 0 : vector<8x128xf32>, i32 -> vector<8x128xf32>
    %c0_1 = arith.constant 0 : index
    %c0_2 = arith.constant 0 : index
    %2 = vector.load %arg1[%c0_1, %c0_2] : memref<8x128xf32, #tpu.memory_space<vmem>>, vector<8x128xf32>
    tpu.vector_store %arg1[%c0_1, %c0_2], %1 {strides = array<i32>} : memref<8x128xf32, #tpu.memory_space<vmem>>, vector<8x128xf32>,
    return
  }
}

</mosaic_0001>

<llo_original>
// kernel: tpu_custom_call.1
$region0: #{tpu_custom_call.1}
  #allocation0 [shape = 'u32[]', space=smem, size = 0x4, offset = 0x4, fixed_abs, tag = 'smem constant byte address 0x4 - core index']
  #allocation1 [shape = 'u32[144,128]{1,0:T(1,128)}', space=vmem, size = 0x12000, scoped, tag = 'internal scratch']
  %s0 = inlined_call_operand.hbm [shape: f32[8,128], index: 0, kind: input, shape index: {}]
  %s1 = inlined_call_operand.hbm [shape: f32[8,128], index: 1, kind: output, shape index: {}]
  %s2 = sld [smem:[#allocation0]]
  $region18: #{tpu_custom_call.1} parent=0
    _
  %s4 = ssub.s32 1, %s2
  %s5 = scalar_select 0, %s4, %s2
  $region1: #{tpu_custom_call.1} parent=0
    #allocation2 [shape = 'u8[4096]{0}', space=vmem, size = 0x1000, scoped, tag = 'input window, operand 0, single buffered']
    #allocation3 [shape = 's32[1]{0}', space=sflag, size = 0x4, scoped, tag = 'scoped memory for tpu_custom_call.1']
    #allocation4 [shape = 's32[1]{0}', space=sflag, size = 0x4, scoped, tag = 'scoped memory for tpu_custom_call.1']
    #allocation5 [shape = 'u8[4096]{0}', space=vmem, size = 0x1000, scoped, tag = 'output window, operand 0, single buffered']
    %6 = vsyncpa [#allocation3], 0
    %7 = vsyncpa [#allocation4], 0
    // Predicated region
    $region2: #{tpu_custom_call.1} parent=1 // pred_check
      _
    $region3: #{tpu_custom_call.1} parent=1 // pred_check_branch
      %9 = sbr.rel (0) target = $region5
    $region4: #{tpu_custom_call.1} parent=1 // pred_region
      %s11 = ssub.s32 128, 128
      %12 = vsyncadd [#allocation3], %s11
      %s14 = sshll.u32 [#allocation2], 4
      %s15 = int_to_ptr.vmem [resolvable:$true] %s14
      %17 = dma.hbm_to_vmem [thread:$0]  %s0, 128, %s15, [#allocation3]
    $region5: #{tpu_custom_call.1} parent=1 // pred_fallthru
      _
    // Predicated region
    $region6: #{tpu_custom_call.1} parent=1 // pred_check
      _
    $region7: #{tpu_custom_call.1} parent=1 // pred_check_branch
      %19 = sbr.rel (0) target = $region9
    $region8: #{tpu_custom_call.1} parent=1 // pred_region
      %20 = dma.done [#allocation3], 128
    $region9: #{tpu_custom_call.1} parent=1 // pred_fallthru
      _
    %v21 = vld [vmem:[#allocation2] sm:$0xff]
    %v22 = vrot.slane %v21, 7
    %23 = vst [vmem:[#allocation5] sm:$0xff] %v22
    // Predicated region
    $region10: #{tpu_custom_call.1} parent=1 // pred_check
      _
    $region11: #{tpu_custom_call.1} parent=1 // pred_check_branch
      %25 = sbr.rel (0) target = $region13
    $region12: #{tpu_custom_call.1} parent=1 // pred_region
      %s27 = ssub.s32 128, 128
      %28 = vsyncadd [#allocation4], %s27
      %s30 = sshll.u32 [#allocation5], 4
      %s31 = int_to_ptr.vmem [resolvable:$true] %s30
      %33 = dma.vmem_to_hbm [thread:$0]  %s31, 128, %s1, [#allocation4]
    $region13: #{tpu_custom_call.1} parent=1 // pred_fallthru
      _
    // Predicated region
    $region14: #{tpu_custom_call.1} parent=1 // pred_check
      _
    $region15: #{tpu_custom_call.1} parent=1 // pred_check_branch
      %35 = sbr.rel (0) target = $region17
    $region16: #{tpu_custom_call.1} parent=1 // pred_region
      %36 = dma.done [#allocation4], 128
    $region17: #{tpu_custom_call.1} parent=1 // pred_fallthru
      _
    %37 = vsyncpa [#allocation3], 1
    %38 = vsyncpa [#allocation4], 1

</llo_original>
